<compile_context>
chip_gen: v6e
topology: v6e:2x2x1
jax: 0.10.0
libtpu: 0.0.40
codegen_flags: <defaults>
</compile_context>

<pallas_src>
import jax
import jax.numpy as jnp
from jax.experimental import pallas as pl
from jax.experimental.pallas import tpu as pltpu


def _attn_kernel(q_ref, c_ref, w_in_t_ref, w_out_c_t_ref, w_out_q_t_ref,
                 out_ref, score_ref):
    # q_ref:   (B_TILE, Lq, D)   c_ref: (B_TILE, Lc, D)
    # w_*_t:   (D, D)  -- already transposed so kernel does x @ W^T as x @ w_t
    bt, lq, d = q_ref.shape
    in_dtype = q_ref.dtype

    # --- linear_in: fold batch into the MXU M dimension ---------------------
    q2d = q_ref[...].reshape(bt * lq, d)                      # native dtype
    qw2d = jnp.dot(q2d, w_in_t_ref[...],
                   preferred_element_type=jnp.float32)        # (bt*lq, D) f32

    c_nat = c_ref[...]                                        # no f32 up-cast
    qw3 = qw2d.astype(in_dtype).reshape(bt, lq, d)

    # --- score = softmax(q' @ c^T) ------------------------------------------
    # Batched contraction over the last dim of both operands: c is consumed in
    # its stored layout (no transposed VMEM copy).
    s = jnp.einsum('bqd,bkd->bqk', qw3, c_nat,
                   preferred_element_type=jnp.float32)        # (bt, Lq, Lc)
    s = s - jnp.max(s, axis=-1, keepdims=True)
    e = jnp.exp(s)
    p = e * pl.reciprocal(jnp.sum(e, axis=-1, keepdims=True), approx=True)

    # --- ctx = score @ c (MXU operands in native dtype, f32 accumulation) ---
    ctx = jnp.einsum('bqk,bkd->bqd', p.astype(in_dtype), c_nat,
                     preferred_element_type=jnp.float32)      # (bt, Lq, D)

    # --- linear_out on cat([ctx, q']) split into two matmuls, then tanh -----
    ctx2d = ctx.reshape(bt * lq, d).astype(w_out_c_t_ref.dtype)
    qw_out = qw2d.astype(w_out_q_t_ref.dtype)
    o = (jnp.dot(ctx2d, w_out_c_t_ref[...], preferred_element_type=jnp.float32)
         + jnp.dot(qw_out, w_out_q_t_ref[...], preferred_element_type=jnp.float32))

    out_ref[...] = jnp.tanh(o).reshape(bt, lq, d).astype(out_ref.dtype)
    score_ref[...] = p.astype(score_ref.dtype)


def _pick_b_tile(b, lq, lc, d, itemsize,
                 row_target=1024, vmem_budget=32 * 1024 * 1024):
    """Largest divisor of b such that the packed M dim stays near row_target
    and the double-buffered activation blocks fit the VMEM budget."""
    best = 1
    for t in range(1, b + 1):
        if b % t:
            continue
        rows = t * lq
        # double-buffered q, c, out blocks (itemsize) + f32 score block
        blk = 2 * (itemsize * (2 * t * lq * d + t * lc * d) + 4 * t * lq * lc)
        if rows <= row_target and blk <= vmem_budget:
            best = t
    # Note (v7x): if the resulting grid collapses to a single step on large
    # batches, halve b_tile so both TensorCores get work.
    return best


def attn_forward(q, c, w_in, w_out, *, b_tile=None):
    """q: (q_len, b, dim), c: (c_len, b, dim)
    w_in: (dim, dim) PyTorch-layout linear_in.weight
    w_out: (dim, 2*dim) PyTorch-layout linear_out.weight
    Returns (out: (q_len, b, dim), score: (b, q_len, c_len))."""
    q_len, b, dim = q.shape
    c_len = c.shape[0]

    # glue: batch-major layout + weight transposes / split (done in XLA)
    qb = jnp.transpose(q, (1, 0, 2))            # (b, q_len, dim)
    cb = jnp.transpose(c, (1, 0, 2))            # (b, c_len, dim)
    w_in_t = w_in.T                             # (dim, dim)
    w_out_c_t = w_out[:, :dim].T                # (dim, dim) acts on ctx
    w_out_q_t = w_out[:, dim:].T                # (dim, dim) acts on q'

    if b_tile is None:
        b_tile = _pick_b_tile(b, q_len, c_len, dim,
                              jnp.dtype(q.dtype).itemsize)
    assert b % b_tile == 0, "b_tile must divide the batch size"

    grid = (b // b_tile,)
    out, score = pl.pallas_call(
        _attn_kernel,
        out_shape=(
            jax.ShapeDtypeStruct((b, q_len, dim), q.dtype),
            jax.ShapeDtypeStruct((b, q_len, c_len), q.dtype),
        ),
        grid_spec=pltpu.PrefetchScalarGridSpec(
            num_scalar_prefetch=0,
            grid=grid,
            in_specs=[
                pl.BlockSpec((b_tile, q_len, dim), lambda i: (i, 0, 0)),
                pl.BlockSpec((b_tile, c_len, dim), lambda i: (i, 0, 0)),
                # constant index maps: weight blocks are not re-fetched
                pl.BlockSpec((dim, dim), lambda i: (0, 0)),
                pl.BlockSpec((dim, dim), lambda i: (0, 0)),
                pl.BlockSpec((dim, dim), lambda i: (0, 0)),
            ],
            out_specs=[
                pl.BlockSpec((b_tile, q_len, dim), lambda i: (i, 0, 0)),
                pl.BlockSpec((b_tile, q_len, c_len), lambda i: (i, 0, 0)),
            ],
        ),
        compiler_params=pltpu.CompilerParams(
            dimension_semantics=("parallel",),
            vmem_limit_bytes=48 * 1024 * 1024),
    )(qb, cb, w_in_t, w_out_c_t, w_out_q_t)

    return jnp.transpose(out, (1, 0, 2)), score


def _reference(q, c, w_in, w_out):
    qb = jnp.transpose(q, (1, 0, 2))
    cb = jnp.transpose(c, (1, 0, 2))
    qw = qb @ w_in.T
    s = qw @ jnp.transpose(cb, (0, 2, 1))
    p = jax.nn.softmax(s, axis=-1)
    ctx = p @ cb
    o = jnp.tanh(jnp.concatenate([ctx, qw], axis=-1) @ w_out.T)
    return jnp.transpose(o, (1, 0, 2)), p


if __name__ == "__main__":
    key = jax.random.PRNGKey(0)
    dim, q_len, c_len, batch = 32, 8, 8, 2

    k1, k2, k3, k4 = jax.random.split(key, 4)
    q = jax.random.normal(k1, (q_len, batch, dim), dtype=jnp.float32)
    c = jax.random.normal(k2, (c_len, batch, dim), dtype=jnp.float32)
    # deterministic parameter init (PyTorch nn.Linear weight shapes, bias=False)
    w_in = jax.random.normal(k3, (dim, dim), dtype=jnp.float32) * 0.1
    w_out = jax.random.normal(k4, (dim, 2 * dim), dtype=jnp.float32) * 0.1

    out, score = attn_forward(q, c, w_in, w_out)
    jax.block_until_ready((out, score))

    ref_out, ref_score = _reference(q, c, w_in, w_out)
    # approx=True reciprocal (EUP vrcp) perturbs softmax weights slightly;
    # tolerance accounts for it.
    assert jnp.allclose(out, ref_out, atol=2e-3, rtol=2e-3)
    assert jnp.allclose(score, ref_score, atol=2e-3, rtol=2e-3)

    print("KERNEL_OK")
</pallas_src>

<mosaic_0001>
module attributes {stable_mosaic.version = 11 : i64} {
  func.func @_attn_kernel(%arg0: i32, %arg1: memref<2x8x32xf32, #tpu.memory_space<vmem>>, %arg2: memref<2x8x32xf32, #tpu.memory_space<vmem>>, %arg3: memref<32x32xf32, #tpu.memory_space<vmem>>, %arg4: memref<32x32xf32, #tpu.memory_space<vmem>>, %arg5: memref<32x32xf32, #tpu.memory_space<vmem>>, %arg6: memref<2x8x32xf32, #tpu.memory_space<vmem>>, %arg7: memref<2x8x8xf32, #tpu.memory_space<vmem>>) attributes {dimension_semantics = [#tpu.dimension_semantics<parallel>], iteration_bounds = array<i64: 1>, scalar_prefetch = 0 : i64, scratch_operands = 0 : i64, tpu.core_type = #tpu.core_type<tc>, window_params = [{transform_indices = @transform_0, window_bounds = array<i64: 2, 8, 32>}, {transform_indices = @transform_1, window_bounds = array<i64: 2, 8, 32>}, {pipeline_mode = #tpu.pipeline_mode<synchronous>, transform_indices = @transform_2, window_bounds = array<i64: 32, 32>}, {pipeline_mode = #tpu.pipeline_mode<synchronous>, transform_indices = @transform_3, window_bounds = array<i64: 32, 32>}, {pipeline_mode = #tpu.pipeline_mode<synchronous>, transform_indices = @transform_4, window_bounds = array<i64: 32, 32>}, {transform_indices = @transform_5, window_bounds = array<i64: 2, 8, 32>}, {transform_indices = @transform_6, window_bounds = array<i64: 2, 8, 8>}]} {
    %c0 = arith.constant 0 : index
    %c0_0 = arith.constant 0 : index
    %c0_1 = arith.constant 0 : index
    %0 = vector.load %arg1[%c0, %c0_0, %c0_1] : memref<2x8x32xf32, #tpu.memory_space<vmem>>, vector<2x8x32xf32>
    %1 = vector.shape_cast %0 : vector<2x8x32xf32> to vector<16x32xf32>
    %c0_2 = arith.constant 0 : index
    %c0_3 = arith.constant 0 : index
    %2 = vector.load %arg3[%c0_2, %c0_3] : memref<32x32xf32, #tpu.memory_space<vmem>>, vector<32x32xf32>
    %cst = arith.constant dense<0.000000e+00> : vector<16x32xf32>
    %3 = tpu.matmul %1, %2, %cst {dimension_numbers = #tpu.dot_dimension_numbers<[1], [0], [0], [1], [0, 0, 1, 1], [], []>} : vector<16x32xf32>, vector<32x32xf32>, vector<16x32xf32> -> vector<16x32xf32>
    %c0_4 = arith.constant 0 : index
    %c0_5 = arith.constant 0 : index
    %c0_6 = arith.constant 0 : index
    %4 = vector.load %arg2[%c0_4, %c0_5, %c0_6] : memref<2x8x32xf32, #tpu.memory_space<vmem>>, vector<2x8x32xf32>
    %5 = vector.shape_cast %3 : vector<16x32xf32> to vector<2x8x32xf32>
    "tpu.trace_start"() <{level = 10 : i32, message = "bqd,bkd->bqk"}> : () -> ()
    %cst_7 = arith.constant dense<0.000000e+00> : vector<2x8x8xf32>
    %6 = tpu.matmul %5, %4, %cst_7 {dimension_numbers = #tpu.dot_dimension_numbers<[2], [2], [1], [1], [0, 0, 0, 1, 1, 1], [0], [0]>} : vector<2x8x32xf32>, vector<2x8x32xf32>, vector<2x8x8xf32> -> vector<2x8x8xf32>
    "tpu.trace_stop"() : () -> ()
    %cst_8 = arith.constant dense<0xFF800000> : vector<2x8xf32>
    %7 = vector.multi_reduction <maximumf>, %6, %cst_8 [2] : vector<2x8x8xf32> to vector<2x8xf32>
    %8 = vector.shape_cast %7 : vector<2x8xf32> to vector<2x8x1xf32>
    %9 = vector.broadcast %8 : vector<2x8x1xf32> to vector<2x8x8xf32>
    %10 = arith.subf %6, %9 : vector<2x8x8xf32>
    %11 = math.exp %10 : vector<2x8x8xf32>
    %cst_9 = arith.constant dense<0.000000e+00> : vector<2x8xf32>
    %12 = vector.multi_reduction <add>, %11, %cst_9 [2] : vector<2x8x8xf32> to vector<2x8xf32>
    %13 = vector.shape_cast %12 : vector<2x8xf32> to vector<2x8x1xf32>
    %14 = tpu.reciprocal %13 {approx = true} : vector<2x8x1xf32> -> vector<2x8x1xf32>
    %15 = vector.broadcast %14 : vector<2x8x1xf32> to vector<2x8x8xf32>
    %16 = arith.mulf %11, %15 : vector<2x8x8xf32>
    "tpu.trace_start"() <{level = 10 : i32, message = "bqk,bkd->bqd"}> : () -> ()
    %cst_10 = arith.constant dense<0.000000e+00> : vector<2x8x32xf32>
    %17 = tpu.matmul %16, %4, %cst_10 {dimension_numbers = #tpu.dot_dimension_numbers<[2], [1], [1], [2], [0, 0, 0, 1, 1, 2], [0], [0]>} : vector<2x8x8xf32>, vector<2x8x32xf32>, vector<2x8x32xf32> -> vector<2x8x32xf32>
    "tpu.trace_stop"() : () -> ()
    %18 = vector.shape_cast %17 : vector<2x8x32xf32> to vector<16x32xf32>
    %c0_11 = arith.constant 0 : index
    %c0_12 = arith.constant 0 : index
    %19 = vector.load %arg4[%c0_11, %c0_12] : memref<32x32xf32, #tpu.memory_space<vmem>>, vector<32x32xf32>
    %cst_13 = arith.constant dense<0.000000e+00> : vector<16x32xf32>
    %20 = tpu.matmul %18, %19, %cst_13 {dimension_numbers = #tpu.dot_dimension_numbers<[1], [0], [0], [1], [0, 0, 1, 1], [], []>} : vector<16x32xf32>, vector<32x32xf32>, vector<16x32xf32> -> vector<16x32xf32>
    %c0_14 = arith.constant 0 : index
    %c0_15 = arith.constant 0 : index
    %21 = vector.load %arg5[%c0_14, %c0_15] : memref<32x32xf32, #tpu.memory_space<vmem>>, vector<32x32xf32>
    %cst_16 = arith.constant dense<0.000000e+00> : vector<16x32xf32>
    %22 = tpu.matmul %3, %21, %cst_16 {dimension_numbers = #tpu.dot_dimension_numbers<[1], [0], [0], [1], [0, 0, 1, 1], [], []>} : vector<16x32xf32>, vector<32x32xf32>, vector<16x32xf32> -> vector<16x32xf32>
    %23 = arith.addf %20, %22 : vector<16x32xf32>
    %24 = math.tanh %23 : vector<16x32xf32>
    %25 = vector.shape_cast %24 : vector<16x32xf32> to vector<2x8x32xf32>
    %c0_17 = arith.constant 0 : index
    %c0_18 = arith.constant 0 : index
    %c0_19 = arith.constant 0 : index
    %26 = vector.load %arg6[%c0_17, %c0_18, %c0_19] : memref<2x8x32xf32, #tpu.memory_space<vmem>>, vector<2x8x32xf32>
    tpu.vector_store %arg6[%c0_17, %c0_18, %c0_19], %25 {strides = array<i32>} : memref<2x8x32xf32, #tpu.memory_space<vmem>>, vector<2x8x32xf32>,
    %c0_20 = arith.constant 0 : index
    %c0_21 = arith.constant 0 : index
    %c0_22 = arith.constant 0 : index
    %27 = vector.load %arg7[%c0_20, %c0_21, %c0_22] : memref<2x8x8xf32, #tpu.memory_space<vmem>>, vector<2x8x8xf32>
    tpu.vector_store %arg7[%c0_20, %c0_21, %c0_22], %16 {strides = array<i32>} : memref<2x8x8xf32, #tpu.memory_space<vmem>>, vector<2x8x8xf32>,
    return
  }
  func.func @transform_0(%arg0: i32) -> (i32, i32, i32) {
    %c0_i32 = arith.constant 0 : i32
    %c0_i32_0 = arith.constant 0 : i32
    %c0_i32_1 = arith.constant 0 : i32
    return %arg0, %c0_i32, %c0_i32_0 : i32, i32, i32
  }
  func.func @transform_1(%arg0: i32) -> (i32, i32, i32) {
    %c0_i32 = arith.constant 0 : i32
    %c0_i32_0 = arith.constant 0 : i32
    %c0_i32_1 = arith.constant 0 : i32
    return %arg0, %c0_i32, %c0_i32_0 : i32, i32, i32
  }
  func.func @transform_2(%arg0: i32) -> (i32, i32) {
    %c0_i32 = arith.constant 0 : i32
    %c0_i32_0 = arith.constant 0 : i32
    %c0_i32_1 = arith.constant 0 : i32
    return %c0_i32, %c0_i32_0 : i32, i32
  }
  func.func @transform_3(%arg0: i32) -> (i32, i32) {
    %c0_i32 = arith.constant 0 : i32
    %c0_i32_0 = arith.constant 0 : i32
    %c0_i32_1 = arith.constant 0 : i32
    return %c0_i32, %c0_i32_0 : i32, i32
  }
  func.func @transform_4(%arg0: i32) -> (i32, i32) {
    %c0_i32 = arith.constant 0 : i32
    %c0_i32_0 = arith.constant 0 : i32
    %c0_i32_1 = arith.constant 0 : i32
    return %c0_i32, %c0_i32_0 : i32, i32
  }
  func.func @transform_5(%arg0: i32) -> (i32, i32, i32) {
    %c0_i32 = arith.constant 0 : i32
    %c0_i32_0 = arith.constant 0 : i32
    %c0_i32_1 = arith.constant 0 : i32
    return %arg0, %c0_i32, %c0_i32_0 : i32, i32, i32
  }
  func.func @transform_6(%arg0: i32) -> (i32, i32, i32) {
    %c0_i32 = arith.constant 0 : i32
    %c0_i32_0 = arith.constant 0 : i32
    %c0_i32_1 = arith.constant 0 : i32
    return %arg0, %c0_i32, %c0_i32_0 : i32, i32, i32
  }
}

</mosaic_0001>

<llo_original>
// kernel: tpu_custom_call.1
$region0: #{tpu_custom_call.1}
  #allocation0 [shape = 'u32[]', space=smem, size = 0x4, offset = 0x4, fixed_abs, tag = 'smem constant byte address 0x4 - core index']
  #allocation1 [shape = 'u32[144,128]{1,0:T(1,128)}', space=vmem, size = 0x12000, scoped, tag = 'internal scratch']
  %s0 = inlined_call_operand.hbm [shape: f32[2,8,32], index: 0, kind: input, shape index: {}]
  %s1 = inlined_call_operand.hbm [shape: f32[2,8,32], index: 1, kind: input, shape index: {}]
  %s2 = inlined_call_operand.hbm [shape: f32[32,32], index: 2, kind: input, shape index: {}]
  %s3 = inlined_call_operand.hbm [shape: f32[32,32], index: 3, kind: input, shape index: {}]
  %s4 = inlined_call_operand.hbm [shape: f32[32,32], index: 4, kind: input, shape index: {}]
  %s5 = inlined_call_operand.hbm [shape: f32[2,8,32], index: 5, kind: output, shape index: {0}]
  %s6 = inlined_call_operand.hbm [shape: f32[2,8,8], index: 6, kind: output, shape index: {1}]
  %7 = xla_tuple %s5, %s6
  %s8 = sld [smem:[#allocation0]]
  $region58: #{tpu_custom_call.1} parent=0
    _
  %s10 = ssub.s32 1, %s8
  %s11 = scalar_select 0, %s10, %s8
  $region1: #{tpu_custom_call.1} parent=0
    #allocation2 [shape = 'u8[8192]{0}', space=vmem, size = 0x2000, scoped, tag = 'input window, operand 0, single buffered']
    #allocation3 [shape = 's32[1]{0}', space=sflag, size = 0x4, scoped, tag = 'scoped memory for tpu_custom_call.1']
    #allocation4 [shape = 's32[1]{0}', space=sflag, size = 0x4, scoped, tag = 'scoped memory for tpu_custom_call.1']
    #allocation5 [shape = 'u8[8192]{0}', space=vmem, size = 0x2000, scoped, tag = 'input window, operand 1, single buffered']
    #allocation6 [shape = 's32[1]{0}', space=sflag, size = 0x4, scoped, tag = 'scoped memory for tpu_custom_call.1']
    #allocation7 [shape = 'u8[16384]{0}', space=vmem, size = 0x4000, scoped, tag = 'input window, operand 2, single buffered']
    #allocation8 [shape = 'u8[16384]{0}', space=vmem, size = 0x4000, scoped, tag = 'input window, operand 3, single buffered']
    #allocation9 [shape = 's32[1]{0}', space=sflag, size = 0x4, scoped, tag = 'scoped memory for tpu_custom_call.1']
    #allocation10 [shape = 'u8[16384]{0}', space=vmem, size = 0x4000, scoped, tag = 'input window, operand 4, single buffered']
    #allocation11 [shape = 'u8[8192]{0}', space=vmem, size = 0x2000, scoped, tag = 'output window, operand 0, single buffered']
    #allocation12 [shape = 'u8[8192]{0}', space=vmem, size = 0x2000, scoped, tag = 'output window, operand 1, single buffered']
    #allocation13 [shape = 's32[1]{0}', space=sflag, size = 0x4, scoped, tag = 'scoped memory for tpu_custom_call.1']
    %12 = vsyncpa [#allocation3], 0
    %13 = vsyncpa [#allocation6], 0
    %14 = vsyncpa [#allocation9], 0
    %15 = vsyncpa [#allocation4], 0
    %16 = vsyncpa [#allocation13], 0
    // Predicated region
    $region2: #{tpu_custom_call.1} parent=1 // pred_check
      _
    $region3: #{tpu_custom_call.1} parent=1 // pred_check_branch
      %18 = sbr.rel (0) target = $region5
    $region4: #{tpu_custom_call.1} parent=1 // pred_region
      %s20 = ssub.s32 256, 256
      %21 = vsyncadd [#allocation3], %s20
      %s22 = sshll.u32 [#allocation2], 4
      %s23 = int_to_ptr.vmem [resolvable:$true] %s22
      %28 = dma.hbm_to_vmem [thread:$0]  %s0, 256, %s23, [#allocation3], 128, 128, 8
    $region5: #{tpu_custom_call.1} parent=1 // pred_fallthru
      _
    // Predicated region
    $region6: #{tpu_custom_call.1} parent=1 // pred_check
      _
    $region7: #{tpu_custom_call.1} parent=1 // pred_check_branch
      %30 = sbr.rel (0) target = $region9
    $region8: #{tpu_custom_call.1} parent=1 // pred_region
      %s32 = ssub.s32 256, 256
      %33 = vsyncadd [#allocation6], %s32
      %s34 = sshll.u32 [#allocation5], 4
      %s35 = int_to_ptr.vmem [resolvable:$true] %s34
      %40 = dma.hbm_to_vmem [thread:$0]  %s1, 256, %s35, [#allocation6], 128, 128, 8
    $region9: #{tpu_custom_call.1} parent=1 // pred_fallthru
      _
    // Predicated region
    $region10: #{tpu_custom_call.1} parent=1 // pred_check
      _
    $region11: #{tpu_custom_call.1} parent=1 // pred_check_branch
      %42 = sbr.rel (0) target = $region13
    $region12: #{tpu_custom_call.1} parent=1 // pred_region
      %s44 = ssub.s32 512, 512
      %45 = vsyncadd [#allocation6], %s44
      %s46 = sshll.u32 [#allocation7], 4
      %s47 = int_to_ptr.vmem [resolvable:$true] %s46
      %52 = dma.hbm_to_vmem [thread:$0]  %s2, 512, %s47, [#allocation6], 128, 128, 8
    $region13: #{tpu_custom_call.1} parent=1 // pred_fallthru
      _
    // Predicated region
    $region14: #{tpu_custom_call.1} parent=1 // pred_check
      _
    $region15: #{tpu_custom_call.1} parent=1 // pred_check_branch
      %54 = sbr.rel (0) target = $region17
    $region16: #{tpu_custom_call.1} parent=1 // pred_region
      %s56 = ssub.s32 512, 512
      %57 = vsyncadd [#allocation9], %s56
      %s58 = sshll.u32 [#allocation8], 4
      %s59 = int_to_ptr.vmem [resolvable:$true] %s58
      %64 = dma.hbm_to_vmem [thread:$0]  %s3, 512, %s59, [#allocation9], 128, 128, 8
    $region17: #{tpu_custom_call.1} parent=1 // pred_fallthru
      _
    // Predicated region
    $region18: #{tpu_custom_call.1} parent=1 // pred_check
      _
    $region19: #{tpu_custom_call.1} parent=1 // pred_check_branch
      %66 = sbr.rel (0) target = $region21
    $region20: #{tpu_custom_call.1} parent=1 // pred_region
      %s68 = ssub.s32 512, 512
      %69 = vsyncadd [#allocation9], %s68
      %s70 = sshll.u32 [#allocation10], 4
      %s71 = int_to_ptr.vmem [resolvable:$true] %s70
      %76 = dma.hbm_to_vmem [thread:$0]  %s4, 512, %s71, [#allocation9], 128, 128, 8
    $region21: #{tpu_custom_call.1} parent=1 // pred_fallthru
      _
    // Predicated region
    $region22: #{tpu_custom_call.1} parent=1 // pred_check
      _
    $region23: #{tpu_custom_call.1} parent=1 // pred_check_branch
      %78 = sbr.rel (0) target = $region25
    $region24: #{tpu_custom_call.1} parent=1 // pred_region
      %79 = dma.done [#allocation3], 256
    $region25: #{tpu_custom_call.1} parent=1 // pred_fallthru
      _
    // Predicated region
    $region26: #{tpu_custom_call.1} parent=1 // pred_check
      _
    $region27: #{tpu_custom_call.1} parent=1 // pred_check_branch
      %81 = sbr.rel (0) target = $region29
    $region28: #{tpu_custom_call.1} parent=1 // pred_region
      %82 = dma.done [#allocation6], 256
    $region29: #{tpu_custom_call.1} parent=1 // pred_fallthru
      _
    // Predicated region
    $region30: #{tpu_custom_call.1} parent=1 // pred_check
      _
    $region31: #{tpu_custom_call.1} parent=1 // pred_check_branch
      %84 = sbr.rel (0) target = $region33
    $region32: #{tpu_custom_call.1} parent=1 // pred_region
      %85 = dma.done [#allocation6], 512
    $region33: #{tpu_custom_call.1} parent=1 // pred_fallthru
      _
    // Predicated region
    $region34: #{tpu_custom_call.1} parent=1 // pred_check
      _
    $region35: #{tpu_custom_call.1} parent=1 // pred_check_branch
      %87 = sbr.rel (0) target = $region37
    $region36: #{tpu_custom_call.1} parent=1 // pred_region
      %88 = dma.done [#allocation9], 512
    $region37: #{tpu_custom_call.1} parent=1 // pred_fallthru
      _
    // Predicated region
    $region38: #{tpu_custom_call.1} parent=1 // pred_check
      _
    $region39: #{tpu_custom_call.1} parent=1 // pred_check_branch
      %90 = sbr.rel (0) target = $region41
    $region40: #{tpu_custom_call.1} parent=1 // pred_region
      %91 = dma.done [#allocation9], 512
    $region41: #{tpu_custom_call.1} parent=1 // pred_fallthru
      _
    %v92 = vld [vmem:[#allocation2] sm:$0xff]
    %v93 = vld [vmem:[#allocation2 + $0x8] sm:$0xff]
    %v94 = vld [vmem:[#allocation7] sm:$0xff]
    %v95 = vld [vmem:[#allocation7 + $0x8] sm:$0xff]
    %v96 = vld [vmem:[#allocation7 + $0x10] sm:$0xff]
    %v97 = vld [vmem:[#allocation7 + $0x18] sm:$0xff]
    %vm98 = vcmask 261120
    %v100 = vsel %vm98, %v92, 0
    %v103 = vsel %vm98, %v93, 0
    %105 = vmatprep.subr.mxu0 0.0
    %106 = vmatpush1.msra.mxu0 0.0
    %107 = vmatprep.subr.mxu0 0.0
    %108 = vmatpush1.msra.mxu0 0.0
    %109 = vmatprep.subr.mxu0 0.0
    %110 = vmatpush1.msra.mxu0 0.0
    %111 = vmatprep.subr.mxu0 0.0
    %112 = vmatpush1.msra.mxu0 0.0
    %113 = vmatprep.subr.mxu0 0.0
    %114 = vmatpush1.msra.mxu0 0.0
    %115 = vmatprep.subr.mxu0 0.0
    %116 = vmatpush1.msra.mxu0 0.0
    %117 = vmatprep.subr.mxu0 0.0
    %118 = vmatpush1.msra.mxu0 0.0
    %119 = vmatprep.subr.mxu0 0.0
    %120 = vmatpush1.msra.mxu0 0.0
    %121 = vmatprep.subr.mxu0 0.0
    %122 = vmatpush1.msra.mxu0 0.0
    %123 = vmatprep.subr.mxu0 0.0
    %124 = vmatpush1.msra.mxu0 0.0
    %125 = vmatprep.subr.mxu0 0.0
    %126 = vmatpush1.msra.mxu0 0.0
    %127 = vmatprep.subr.mxu0 0.0
    %128 = vmatpush1.msra.mxu0 0.0
    %129 = vmatprep.subr.mxu0 0.0
    %130 = vmatpush1.msra.mxu0 %v97
    %131 = vmatprep.subr.mxu0 0.0
    %132 = vmatpush1.msra.mxu0 %v96
    %133 = vmatprep.subr.mxu0 0.0
    %134 = vmatpush1.msra.mxu0 %v95
    %135 = vmatprep.subr.mxu0 0.0
    %136 = vmatpush1.msra.mxu0 %v94
    %137 = vmatprep.subr.mxu0 0.0
    %138 = vmatpush2.msra.mxu0 0.0
    %139 = vmatprep.subr.mxu0 0.0
    %140 = vmatpush2.msra.mxu0 0.0
    %141 = vmatprep.subr.mxu0 0.0
    %142 = vmatpush2.msra.mxu0 0.0
    %143 = vmatprep.subr.mxu0 0.0
    %144 = vmatpush2.msra.mxu0 0.0
    %145 = vmatprep.subr.mxu0 0.0
    %146 = vmatpush2.msra.mxu0 0.0
    %147 = vmatprep.subr.mxu0 0.0
    %148 = vmatpush2.msra.mxu0 0.0
    %149 = vmatprep.subr.mxu0 0.0
    %150 = vmatpush2.msra.mxu0 0.0
    %151 = vmatprep.subr.mxu0 0.0
    %152 = vmatpush2.msra.mxu0 0.0
    %153 = vmatprep.subr.mxu0 0.0
    %154 = vmatpush2.msra.mxu0 0.0
    %155 = vmatprep.subr.mxu0 0.0
    %156 = vmatpush2.msra.mxu0 0.0
    %157 = vmatprep.subr.mxu0 0.0
    %158 = vmatpush2.msra.mxu0 0.0
    %159 = vmatprep.subr.mxu0 0.0
    %160 = vmatpush2.msra.mxu0 0.0
    %161 = vmatprep.subr.mxu0 0.0
    %162 = vmatpush2.msra.mxu0 0.0
    %163 = vmatprep.subr.mxu0 0.0
    %164 = vmatpush2.msra.mxu0 0.0
    %165 = vmatprep.subr.mxu0 0.0
    %166 = vmatpush2.msra.mxu0 0.0
    %167 = vmatprep.subr.mxu0 0.0
    %168 = vmatpush2.msra.mxu0 0.0
    %169 = vmatprep.mubr.f32.mxu0 0.0
    %170 = vmatmul.mubr.f32.gmra.mxu0 %v100
    %v171 = vpop.f32.mrf.mxu0
    %v172 = vadd.f32 0.0, %v171
    %v173 = vpop.f32.mrf.mxu0
    %174 = vmatprep.mubr.f32.mxu0 0.0
    %175 = vmatmul.mubr.f32.gmra.mxu0 %v103
    %v176 = vpop.f32.mrf.mxu0
    %v177 = vadd.f32 0.0, %v176
    %v178 = vpop.f32.mrf.mxu0
    %179 = vdwg.mxu0
    %v180 = vld [vmem:[#allocation5] sm:$0xff]
    %v181 = vld [vmem:[#allocation5 + $0x8] sm:$0xff]
    %v183 = vsel %vm98, %v172, 0
    %v186 = vsel %vm98, %v180, 0
    %188 = vmatprep.subr.mxu0 0.0
    %189 = vmatpush1.xpose.msra.mxu0 0.0
    %190 = vmatprep.subr.mxu0 0.0
    %191 = vmatpush1.xpose.msra.mxu0 0.0
    %192 = vmatprep.subr.mxu0 0.0
    %193 = vmatpush1.xpose.msra.mxu0 0.0
    %194 = vmatprep.subr.mxu0 0.0
    %195 = vmatpush1.xpose.msra.mxu0 0.0
    %196 = vmatprep.subr.mxu0 0.0
    %197 = vmatpush1.xpose.msra.mxu0 0.0
    %198 = vmatprep.subr.mxu0 0.0
    %199 = vmatpush1.xpose.msra.mxu0 0.0
    %200 = vmatprep.subr.mxu0 0.0
    %201 = vmatpush1.xpose.msra.mxu0 0.0
    %202 = vmatprep.subr.mxu0 0.0
    %203 = vmatpush1.xpose.msra.mxu0 0.0
    %204 = vmatprep.subr.mxu0 0.0
    %205 = vmatpush1.xpose.msra.mxu0 0.0
    %206 = vmatprep.subr.mxu0 0.0
    %207 = vmatpush1.xpose.msra.mxu0 0.0
    %208 = vmatprep.subr.mxu0 0.0
    %209 = vmatpush1.xpose.msra.mxu0 0.0
    %210 = vmatprep.subr.mxu0 0.0
    %211 = vmatpush1.xpose.msra.mxu0 0.0
    %212 = vmatprep.subr.mxu0 0.0
    %213 = vmatpush1.xpose.msra.mxu0 0.0
    %214 = vmatprep.subr.mxu0 0.0
    %215 = vmatpush1.xpose.msra.mxu0 0.0
    %216 = vmatprep.subr.mxu0 0.0
    %217 = vmatpush1.xpose.msra.mxu0 0.0
    %218 = vmatprep.subr.mxu0 0.0
    %219 = vmatpush1.xpose.msra.mxu0 %v186
    %220 = vmatprep.subr.mxu0 0.0
    %221 = vmatpush2.xpose.msra.mxu0 0.0
    %222 = vmatprep.subr.mxu0 0.0
    %223 = vmatpush2.xpose.msra.mxu0 0.0
    %224 = vmatprep.subr.mxu0 0.0
    %225 = vmatpush2.xpose.msra.mxu0 0.0
    %226 = vmatprep.subr.mxu0 0.0
    %227 = vmatpush2.xpose.msra.mxu0 0.0
    %228 = vmatprep.subr.mxu0 0.0
    %229 = vmatpush2.xpose.msra.mxu0 0.0
    %230 = vmatprep.subr.mxu0 0.0
    %231 = vmatpush2.xpose.msra.mxu0 0.0
    %232 = vmatprep.subr.mxu0 0.0
    %233 = vmatpush2.xpose.msra.mxu0 0.0
    %234 = vmatprep.subr.mxu0 0.0
    %235 = vmatpush2.xpose.msra.mxu0 0.0
    %236 = vmatprep.subr.mxu0 0.0
    %237 = vmatpush2.xpose.msra.mxu0 0.0
    %238 = vmatprep.subr.mxu0 0.0
    %239 = vmatpush2.xpose.msra.mxu0 0.0
    %240 = vmatprep.subr.mxu0 0.0
    %241 = vmatpush2.xpose.msra.mxu0 0.0
    %242 = vmatprep.subr.mxu0 0.0
    %243 = vmatpush2.xpose.msra.mxu0 0.0
    %244 = vmatprep.subr.mxu0 0.0
    %245 = vmatpush2.xpose.msra.mxu0 0.0
    %246 = vmatprep.subr.mxu0 0.0
    %247 = vmatpush2.xpose.msra.mxu0 0.0
    %248 = vmatprep.subr.mxu0 0.0
    %249 = vmatpush2.xpose.msra.mxu0 0.0
    %250 = vmatprep.subr.mxu0 0.0
    %251 = vmatpush2.xpose.msra.mxu0 0.0
    %252 = vmatprep.mubr.f32.mxu0 0.0
    %253 = vmatmul.mubr.f32.gmra.mxu0 %v183
    %v254 = vpop.f32.mrf.mxu0
    %v255 = vadd.f32 0.0, %v254
    %v256 = vpop.f32.mrf.mxu0
    %257 = vdwg.mxu0
    %v259 = vsel %vm98, %v177, 0
    %v262 = vsel %vm98, %v181, 0
    %264 = vmatprep.subr.mxu0 0.0
    %265 = vmatpush1.xpose.msra.mxu0 0.0
    %266 = vmatprep.subr.mxu0 0.0
    %267 = vmatpush1.xpose.msra.mxu0 0.0
    %268 = vmatprep.subr.mxu0 0.0
    %269 = vmatpush1.xpose.msra.mxu0 0.0
    %270 = vmatprep.subr.mxu0 0.0
    %271 = vmatpush1.xpose.msra.mxu0 0.0
    %272 = vmatprep.subr.mxu0 0.0
    %273 = vmatpush1.xpose.msra.mxu0 0.0
    %274 = vmatprep.subr.mxu0 0.0
    %275 = vmatpush1.xpose.msra.mxu0 0.0
    %276 = vmatprep.subr.mxu0 0.0
    %277 = vmatpush1.xpose.msra.mxu0 0.0
    %278 = vmatprep.subr.mxu0 0.0
    %279 = vmatpush1.xpose.msra.mxu0 0.0
    %280 = vmatprep.subr.mxu0 0.0
    %281 = vmatpush1.xpose.msra.mxu0 0.0
    %282 = vmatprep.subr.mxu0 0.0
    %283 = vmatpush1.xpose.msra.mxu0 0.0
    %284 = vmatprep.subr.mxu0 0.0
    %285 = vmatpush1.xpose.msra.mxu0 0.0
    %286 = vmatprep.subr.mxu0 0.0
    %287 = vmatpush1.xpose.msra.mxu0 0.0
    %288 = vmatprep.subr.mxu0 0.0
    %289 = vmatpush1.xpose.msra.mxu0 0.0
    %290 = vmatprep.subr.mxu0 0.0
    %291 = vmatpush1.xpose.msra.mxu0 0.0
    %292 = vmatprep.subr.mxu0 0.0
    %293 = vmatpush1.xpose.msra.mxu0 0.0
    %294 = vmatprep.subr.mxu0 0.0
    %295 = vmatpush1.xpose.msra.mxu0 %v262
    %296 = vmatprep.subr.mxu0 0.0
    %297 = vmatpush2.xpose.msra.mxu0 0.0
    %298 = vmatprep.subr.mxu0 0.0
    %299 = vmatpush2.xpose.msra.mxu0 0.0
    %300 = vmatprep.subr.mxu0 0.0
    %301 = vmatpush2.xpose.msra.mxu0 0.0
    %302 = vmatprep.subr.mxu0 0.0
    %303 = vmatpush2.xpose.msra.mxu0 0.0
    %304 = vmatprep.subr.mxu0 0.0
    %305 = vmatpush2.xpose.msra.mxu0 0.0
    %306 = vmatprep.subr.mxu0 0.0
    %307 = vmatpush2.xpose.msra.mxu0 0.0
    %308 = vmatprep.subr.mxu0 0.0
    %309 = vmatpush2.xpose.msra.mxu0 0.0
    %310 = vmatprep.subr.mxu0 0.0
    %311 = vmatpush2.xpose.msra.mxu0 0.0
    %312 = vmatprep.subr.mxu0 0.0
    %313 = vmatpush2.xpose.msra.mxu0 0.0
    %314 = vmatprep.subr.mxu0 0.0
    %315 = vmatpush2.xpose.msra.mxu0 0.0
    %316 = vmatprep.subr.mxu0 0.0
    %317 = vmatpush2.xpose.msra.mxu0 0.0
    %318 = vmatprep.subr.mxu0 0.0
    %319 = vmatpush2.xpose.msra.mxu0 0.0
    %320 = vmatprep.subr.mxu0 0.0
    %321 = vmatpush2.xpose.msra.mxu0 0.0
    %322 = vmatprep.subr.mxu0 0.0
    %323 = vmatpush2.xpose.msra.mxu0 0.0
    %324 = vmatprep.subr.mxu0 0.0
    %325 = vmatpush2.xpose.msra.mxu0 0.0
    %326 = vmatprep.subr.mxu0 0.0
    %327 = vmatpush2.xpose.msra.mxu0 0.0
    %328 = vmatprep.mubr.f32.mxu0 0.0
    %329 = vmatmul.mubr.f32.gmra.mxu0 %v259
    %v330 = vpop.f32.mrf.mxu0
    %v331 = vadd.f32 0.0, %v330
    %v332 = vpop.f32.mrf.mxu0
    %333 = vdwg.mxu0
    %vm334 = vcmask 64512
    %v335 = vsel %vm334, %v255, -inf
    %336 = vmax.xlane.f32.xlu0 %v335
    %v337 = vpop.xlane.xlu0 %336
    %v338 = vsel %vm334, %v331, -inf
    %339 = vmax.xlane.f32.xlu0 %v338
    %v340 = vpop.xlane.xlu0 %339
    %v341 = vsub.f32 %v255, %v337
    %v342 = vsub.f32 %v331, %v340
    %v343 = vmul.f32 %v341, 1.442695
    %v344 = vpow.pop %v343
    %v345 = vmul.f32 %v342, 1.442695
    %v346 = vpow.pop %v345
    %v347 = vsel %vm334, %v344, 0.0
    %348 = vadd.xlane.f32.xlu0 %v347
    %v349 = vpop.xlane.xlu0 %348
    %v350 = vsel %vm334, %v346, 0.0
    %351 = vadd.xlane.f32.xlu0 %v350
    %v352 = vpop.xlane.xlu0 %351
    %v353 = vrcp.pop %v349
    %v354 = vrcp.pop %v352
    %v355 = vmul.f32 %v344, %v353
    %v356 = vmul.f32 %v346, %v354
    %v358 = vsel %vm334, %v355, 0
    %360 = vmatprep.subr.mxu0 0.0
    %361 = vmatpush1.msra.mxu0 0.0
    %362 = vmatprep.subr.mxu0 0.0
    %363 = vmatpush1.msra.mxu0 0.0
    %364 = vmatprep.subr.mxu0 0.0
    %365 = vmatpush1.msra.mxu0 0.0
    %366 = vmatprep.subr.mxu0 0.0
    %367 = vmatpush1.msra.mxu0 0.0
    %368 = vmatprep.subr.mxu0 0.0
    %369 = vmatpush1.msra.mxu0 0.0
    %370 = vmatprep.subr.mxu0 0.0
    %371 = vmatpush1.msra.mxu0 0.0
    %372 = vmatprep.subr.mxu0 0.0
    %373 = vmatpush1.msra.mxu0 0.0
    %374 = vmatprep.subr.mxu0 0.0
    %375 = vmatpush1.msra.mxu0 0.0
    %376 = vmatprep.subr.mxu0 0.0
    %377 = vmatpush1.msra.mxu0 0.0
    %378 = vmatprep.subr.mxu0 0.0
    %379 = vmatpush1.msra.mxu0 0.0
    %380 = vmatprep.subr.mxu0 0.0
    %381 = vmatpush1.msra.mxu0 0.0
    %382 = vmatprep.subr.mxu0 0.0
    %383 = vmatpush1.msra.mxu0 0.0
    %384 = vmatprep.subr.mxu0 0.0
    %385 = vmatpush1.msra.mxu0 0.0
    %386 = vmatprep.subr.mxu0 0.0
    %387 = vmatpush1.msra.mxu0 0.0
    %388 = vmatprep.subr.mxu0 0.0
    %389 = vmatpush1.msra.mxu0 0.0
    %390 = vmatprep.subr.mxu0 0.0
    %391 = vmatpush1.msra.mxu0 %v180
    %392 = vmatprep.subr.mxu0 0.0
    %393 = vmatpush2.msra.mxu0 0.0
    %394 = vmatprep.subr.mxu0 0.0
    %395 = vmatpush2.msra.mxu0 0.0
    %396 = vmatprep.subr.mxu0 0.0
    %397 = vmatpush2.msra.mxu0 0.0
    %398 = vmatprep.subr.mxu0 0.0
    %399 = vmatpush2.msra.mxu0 0.0
    %400 = vmatprep.subr.mxu0 0.0
    %401 = vmatpush2.msra.mxu0 0.0
    %402 = vmatprep.subr.mxu0 0.0
    %403 = vmatpush2.msra.mxu0 0.0
    %404 = vmatprep.subr.mxu0 0.0
    %405 = vmatpush2.msra.mxu0 0.0
    %406 = vmatprep.subr.mxu0 0.0
    %407 = vmatpush2.msra.mxu0 0.0
    %408 = vmatprep.subr.mxu0 0.0
    %409 = vmatpush2.msra.mxu0 0.0
    %410 = vmatprep.subr.mxu0 0.0
    %411 = vmatpush2.msra.mxu0 0.0
    %412 = vmatprep.subr.mxu0 0.0
    %413 = vmatpush2.msra.mxu0 0.0
    %414 = vmatprep.subr.mxu0 0.0
    %415 = vmatpush2.msra.mxu0 0.0
    %416 = vmatprep.subr.mxu0 0.0
    %417 = vmatpush2.msra.mxu0 0.0
    %418 = vmatprep.subr.mxu0 0.0
    %419 = vmatpush2.msra.mxu0 0.0
    %420 = vmatprep.subr.mxu0 0.0
    %421 = vmatpush2.msra.mxu0 0.0
    %422 = vmatprep.subr.mxu0 0.0
    %423 = vmatpush2.msra.mxu0 0.0
    %424 = vmatprep.mubr.f32.mxu0 0.0
    %425 = vmatmul.mubr.f32.gmra.mxu0 %v358
    %v426 = vpop.f32.mrf.mxu0
    %v427 = vadd.f32 0.0, %v426
    %v428 = vpop.f32.mrf.mxu0
    %429 = vdwg.mxu0
    %v431 = vsel %vm334, %v356, 0
    %433 = vmatprep.subr.mxu0 0.0
    %434 = vmatpush1.msra.mxu0 0.0
    %435 = vmatprep.subr.mxu0 0.0
    %436 = vmatpush1.msra.mxu0 0.0
    %437 = vmatprep.subr.mxu0 0.0
    %438 = vmatpush1.msra.mxu0 0.0
    %439 = vmatprep.subr.mxu0 0.0
    %440 = vmatpush1.msra.mxu0 0.0
    %441 = vmatprep.subr.mxu0 0.0
    %442 = vmatpush1.msra.mxu0 0.0
    %443 = vmatprep.subr.mxu0 0.0
    %444 = vmatpush1.msra.mxu0 0.0
    %445 = vmatprep.subr.mxu0 0.0
    %446 = vmatpush1.msra.mxu0 0.0
    %447 = vmatprep.subr.mxu0 0.0
    %448 = vmatpush1.msra.mxu0 0.0
    %449 = vmatprep.subr.mxu0 0.0
    %450 = vmatpush1.msra.mxu0 0.0
    %451 = vmatprep.subr.mxu0 0.0
    %452 = vmatpush1.msra.mxu0 0.0
    %453 = vmatprep.subr.mxu0 0.0
    %454 = vmatpush1.msra.mxu0 0.0
    %455 = vmatprep.subr.mxu0 0.0
    %456 = vmatpush1.msra.mxu0 0.0
    %457 = vmatprep.subr.mxu0 0.0
    %458 = vmatpush1.msra.mxu0 0.0
    %459 = vmatprep.subr.mxu0 0.0
    %460 = vmatpush1.msra.mxu0 0.0
    %461 = vmatprep.subr.mxu0 0.0
    %462 = vmatpush1.msra.mxu0 0.0
    %463 = vmatprep.subr.mxu0 0.0
    %464 = vmatpush1.msra.mxu0 %v181
    %465 = vmatprep.subr.mxu0 0.0
    %466 = vmatpush2.msra.mxu0 0.0
    %467 = vmatprep.subr.mxu0 0.0
    %468 = vmatpush2.msra.mxu0 0.0
    %469 = vmatprep.subr.mxu0 0.0
    %470 = vmatpush2.msra.mxu0 0.0
    %471 = vmatprep.subr.mxu0 0.0
    %472 = vmatpush2.msra.mxu0 0.0
    %473 = vmatprep.subr.mxu0 0.0
    %474 = vmatpush2.msra.mxu0 0.0
    %475 = vmatprep.subr.mxu0 0.0
    %476 = vmatpush2.msra.mxu0 0.0
    %477 = vmatprep.subr.mxu0 0.0
    %478 = vmatpush2.msra.mxu0 0.0
    %479 = vmatprep.subr.mxu0 0.0
    %480 = vmatpush2.msra.mxu0 0.0
    %481 = vmatprep.subr.mxu0 0.0
    %482 = vmatpush2.msra.mxu0 0.0
    %483 = vmatprep.subr.mxu0 0.0
    %484 = vmatpush2.msra.mxu0 0.0
    %485 = vmatprep.subr.mxu0 0.0
    %486 = vmatpush2.msra.mxu0 0.0
    %487 = vmatprep.subr.mxu0 0.0
    %488 = vmatpush2.msra.mxu0 0.0
    %489 = vmatprep.subr.mxu0 0.0
    %490 = vmatpush2.msra.mxu0 0.0
    %491 = vmatprep.subr.mxu0 0.0
    %492 = vmatpush2.msra.mxu0 0.0
    %493 = vmatprep.subr.mxu0 0.0
    %494 = vmatpush2.msra.mxu0 0.0
    %495 = vmatprep.subr.mxu0 0.0
    %496 = vmatpush2.msra.mxu0 0.0
    %497 = vmatprep.mubr.f32.mxu0 0.0
    %498 = vmatmul.mubr.f32.gmra.mxu0 %v431
    %v499 = vpop.f32.mrf.mxu0
    %v500 = vadd.f32 0.0, %v499
    %v501 = vpop.f32.mrf.mxu0
    %502 = vdwg.mxu0
    %v503 = vld [vmem:[#allocation8] sm:$0xff]
    %v504 = vld [vmem:[#allocation8 + $0x8] sm:$0xff]
    %v505 = vld [vmem:[#allocation8 + $0x10] sm:$0xff]
    %v506 = vld [vmem:[#allocation8 + $0x18] sm:$0xff]
    %v507 = vld [vmem:[#allocation10] sm:$0xff]
    %v508 = vld [vmem:[#allocation10 + $0x8] sm:$0xff]
    %v509 = vld [vmem:[#allocation10 + $0x10] sm:$0xff]
    %v510 = vld [vmem:[#allocation10 + $0x18] sm:$0xff]
    %511 = vmatprep.subr.mxu0 0.0
    %512 = vmatpush1.msra.mxu0 0.0
    %513 = vmatprep.subr.mxu0 0.0
    %514 = vmatpush1.msra.mxu0 0.0
    %515 = vmatprep.subr.mxu0 0.0
    %516 = vmatpush1.msra.mxu0 0.0
    %517 = vmatprep.subr.mxu0 0.0
    %518 = vmatpush1.msra.mxu0 0.0
    %519 = vmatprep.subr.mxu0 0.0
    %520 = vmatpush1.msra.mxu0 0.0
    %521 = vmatprep.subr.mxu0 0.0
    %522 = vmatpush1.msra.mxu0 0.0
    %523 = vmatprep.subr.mxu0 0.0
    %524 = vmatpush1.msra.mxu0 0.0
    %525 = vmatprep.subr.mxu0 0.0
    %526 = vmatpush1.msra.mxu0 0.0
    %527 = vmatprep.subr.mxu0 0.0
    %528 = vmatpush1.msra.mxu0 0.0
    %529 = vmatprep.subr.mxu0 0.0
    %530 = vmatpush1.msra.mxu0 0.0
    %531 = vmatprep.subr.mxu0 0.0
    %532 = vmatpush1.msra.mxu0 0.0
    %533 = vmatprep.subr.mxu0 0.0
    %534 = vmatpush1.msra.mxu0 0.0
    %535 = vmatprep.subr.mxu0 0.0
    %536 = vmatpush1.msra.mxu0 %v510
    %537 = vmatprep.subr.mxu0 0.0
    %538 = vmatpush1.msra.mxu0 %v509
    %539 = vmatprep.subr.mxu0 0.0
    %540 = vmatpush1.msra.mxu0 %v508
    %541 = vmatprep.subr.mxu0 0.0
    %542 = vmatpush1.msra.mxu0 %v507
    %543 = vmatprep.subr.mxu0 0.0
    %544 = vmatpush2.msra.mxu0 0.0
    %545 = vmatprep.subr.mxu0 0.0
    %546 = vmatpush2.msra.mxu0 0.0
    %547 = vmatprep.subr.mxu0 0.0
    %548 = vmatpush2.msra.mxu0 0.0
    %549 = vmatprep.subr.mxu0 0.0
    %550 = vmatpush2.msra.mxu0 0.0
    %551 = vmatprep.subr.mxu0 0.0
    %552 = vmatpush2.msra.mxu0 0.0
    %553 = vmatprep.subr.mxu0 0.0
    %554 = vmatpush2.msra.mxu0 0.0
    %555 = vmatprep.subr.mxu0 0.0
    %556 = vmatpush2.msra.mxu0 0.0
    %557 = vmatprep.subr.mxu0 0.0
    %558 = vmatpush2.msra.mxu0 0.0
    %559 = vmatprep.subr.mxu0 0.0
    %560 = vmatpush2.msra.mxu0 0.0
    %561 = vmatprep.subr.mxu0 0.0
    %562 = vmatpush2.msra.mxu0 0.0
    %563 = vmatprep.subr.mxu0 0.0
    %564 = vmatpush2.msra.mxu0 0.0
    %565 = vmatprep.subr.mxu0 0.0
    %566 = vmatpush2.msra.mxu0 0.0
    %567 = vmatprep.subr.mxu0 0.0
    %568 = vmatpush2.msra.mxu0 0.0
    %569 = vmatprep.subr.mxu0 0.0
    %570 = vmatpush2.msra.mxu0 0.0
    %571 = vmatprep.subr.mxu0 0.0
    %572 = vmatpush2.msra.mxu0 0.0
    %573 = vmatprep.subr.mxu0 0.0
    %574 = vmatpush2.msra.mxu0 0.0
    %575 = vmatprep.mubr.f32.mxu0 0.0
    %576 = vmatmul.mubr.f32.gmra.mxu0 %v183
    %v577 = vpop.f32.mrf.mxu0
    %v578 = vadd.f32 0.0, %v577
    %v579 = vpop.f32.mrf.mxu0
    %580 = vmatprep.mubr.f32.mxu0 0.0
    %581 = vmatmul.mubr.f32.gmra.mxu0 %v259
    %v582 = vpop.f32.mrf.mxu0
    %v583 = vadd.f32 0.0, %v582
    %v584 = vpop.f32.mrf.mxu0
    %585 = vdwg.mxu0
    %v587 = vsel %vm98, %v427, 0
    %v590 = vsel %vm98, %v500, 0
    %592 = vmatprep.subr.mxu0 0.0
    %593 = vmatpush1.msra.mxu0 0.0
    %594 = vmatprep.subr.mxu0 0.0
    %595 = vmatpush1.msra.mxu0 0.0
    %596 = vmatprep.subr.mxu0 0.0
    %597 = vmatpush1.msra.mxu0 0.0
    %598 = vmatprep.subr.mxu0 0.0
    %599 = vmatpush1.msra.mxu0 0.0
    %600 = vmatprep.subr.mxu0 0.0
    %601 = vmatpush1.msra.mxu0 0.0
    %602 = vmatprep.subr.mxu0 0.0
    %603 = vmatpush1.msra.mxu0 0.0
    %604 = vmatprep.subr.mxu0 0.0
    %605 = vmatpush1.msra.mxu0 0.0
    %606 = vmatprep.subr.mxu0 0.0
    %607 = vmatpush1.msra.mxu0 0.0
    %608 = vmatprep.subr.mxu0 0.0
    %609 = vmatpush1.msra.mxu0 0.0
    %610 = vmatprep.subr.mxu0 0.0
    %611 = vmatpush1.msra.mxu0 0.0
    %612 = vmatprep.subr.mxu0 0.0
    %613 = vmatpush1.msra.mxu0 0.0
    %614 = vmatprep.subr.mxu0 0.0
    %615 = vmatpush1.msra.mxu0 0.0
    %616 = vmatprep.subr.mxu0 0.0
    %617 = vmatpush1.msra.mxu0 %v506
    %618 = vmatprep.subr.mxu0 0.0
    %619 = vmatpush1.msra.mxu0 %v505
    %620 = vmatprep.subr.mxu0 0.0
    %621 = vmatpush1.msra.mxu0 %v504
    %622 = vmatprep.subr.mxu0 0.0
    %623 = vmatpush1.msra.mxu0 %v503
    %624 = vmatprep.subr.mxu0 0.0
    %625 = vmatpush2.msra.mxu0 0.0
    %626 = vmatprep.subr.mxu0 0.0
    %627 = vmatpush2.msra.mxu0 0.0
    %628 = vmatprep.subr.mxu0 0.0
    %629 = vmatpush2.msra.mxu0 0.0
    %630 = vmatprep.subr.mxu0 0.0
    %631 = vmatpush2.msra.mxu0 0.0
    %632 = vmatprep.subr.mxu0 0.0
    %633 = vmatpush2.msra.mxu0 0.0
    %634 = vmatprep.subr.mxu0 0.0
    %635 = vmatpush2.msra.mxu0 0.0
    %636 = vmatprep.subr.mxu0 0.0
    %637 = vmatpush2.msra.mxu0 0.0
    %638 = vmatprep.subr.mxu0 0.0
    %639 = vmatpush2.msra.mxu0 0.0
    %640 = vmatprep.subr.mxu0 0.0
    %641 = vmatpush2.msra.mxu0 0.0
    %642 = vmatprep.subr.mxu0 0.0
    %643 = vmatpush2.msra.mxu0 0.0
    %644 = vmatprep.subr.mxu0 0.0
    %645 = vmatpush2.msra.mxu0 0.0
    %646 = vmatprep.subr.mxu0 0.0
    %647 = vmatpush2.msra.mxu0 0.0
    %648 = vmatprep.subr.mxu0 0.0
    %649 = vmatpush2.msra.mxu0 0.0
    %650 = vmatprep.subr.mxu0 0.0
    %651 = vmatpush2.msra.mxu0 0.0
    %652 = vmatprep.subr.mxu0 0.0
    %653 = vmatpush2.msra.mxu0 0.0
    %654 = vmatprep.subr.mxu0 0.0
    %655 = vmatpush2.msra.mxu0 0.0
    %656 = vmatprep.mubr.f32.mxu0 0.0
    %657 = vmatmul.mubr.f32.gmra.mxu0 %v587
    %v658 = vpop.f32.mrf.mxu0
    %v659 = vadd.f32 %v578, %v658
    %v660 = vpop.f32.mrf.mxu0
    %661 = vmatprep.mubr.f32.mxu0 0.0
    %662 = vmatmul.mubr.f32.gmra.mxu0 %v590
    %v663 = vpop.f32.mrf.mxu0
    %v664 = vadd.f32 %v583, %v663
    %v665 = vpop.f32.mrf.mxu0
    %666 = vdwg.mxu0
    %v667 = vtanh.pop %v659
    %v668 = vtanh.pop %v664
    %669 = vst.msk [vmem:[#allocation11] sm:$0xff] %vm98, %v667
    %670 = vst.msk [vmem:[#allocation11 + $0x8] sm:$0xff] %vm98, %v668
    %671 = vst.msk [vmem:[#allocation12] sm:$0xff] %vm334, %v355
    %672 = vst.msk [vmem:[#allocation12 + $0x8] sm:$0xff] %vm334, %v356
    // Predicated region
    $region42: #{tpu_custom_call.1} parent=1 // pred_check
      _
    $region43: #{tpu_custom_call.1} parent=1 // pred_check_branch
      %674 = sbr.rel (0) target = $region45
    $region44: #{tpu_custom_call.1} parent=1 // pred_region
      %s676 = ssub.s32 256, 256
      %677 = vsyncadd [#allocation4], %s676
      %s678 = sshll.u32 [#allocation11], 4
      %s679 = int_to_ptr.vmem [resolvable:$true] %s678
      %684 = dma.vmem_to_hbm [thread:$0]  %s679, 256, %s5, [#allocation4], 128, 128, 8
    $region45: #{tpu_custom_call.1} parent=1 // pred_fallthru
      _
    // Predicated region
    $region46: #{tpu_custom_call.1} parent=1 // pred_check
      _
    $region47: #{tpu_custom_call.1} parent=1 // pred_check_branch
      %686 = sbr.rel (0) target = $region49
    $region48: #{tpu_custom_call.1} parent=1 // pred_region
      %s688 = ssub.s32 256, 256
      %689 = vsyncadd [#allocation13], %s688
      %s690 = sshll.u32 [#allocation12], 4
      %s691 = int_to_ptr.vmem [resolvable:$true] %s690
      %696 = dma.vmem_to_hbm [thread:$0]  %s691, 256, %s6, [#allocation13], 128, 128, 8
    $region49: #{tpu_custom_call.1} parent=1 // pred_fallthru
      _
    // Predicated region
    $region50: #{tpu_custom_call.1} parent=1 // pred_check
      _
    $region51: #{tpu_custom_call.1} parent=1 // pred_check_branch
      %698 = sbr.rel (0) target = $region53
    $region52: #{tpu_custom_call.1} parent=1 // pred_region
      %699 = dma.done [#allocation4], 256
    $region53: #{tpu_custom_call.1} parent=1 // pred_fallthru
      _
    // Predicated region
    $region54: #{tpu_custom_call.1} parent=1 // pred_check
      _
    $region55: #{tpu_custom_call.1} parent=1 // pred_check_branch
      %701 = sbr.rel (0) target = $region57
    $region56: #{tpu_custom_call.1} parent=1 // pred_region
      %702 = dma.done [#allocation13], 256
    $region57: #{tpu_custom_call.1} parent=1 // pred_fallthru
      _
    %703 = vsyncpa [#allocation3], 1
    %704 = vsyncpa [#allocation6], 1
    %705 = vsyncpa [#allocation9], 1
    %706 = vsyncpa [#allocation4], 1
    %707 = vsyncpa [#allocation13], 1

</llo_original>
